<compile_context>
chip_gen: v7x
topology: tpu7x:2x2x1
jax: 0.10.0
libtpu: 0.0.40
codegen_flags: <defaults>
</compile_context>

<pallas_src>
import functools

import jax
import jax.numpy as jnp
from jax import lax
from jax.experimental import pallas as pl
from jax.experimental.pallas import tpu as pltpu


def _tv_kernel(x_ref, out_ref, *, T, H, W):
    """One grid step: rows = (#slices_in_block * T), lanes = H*W."""
    xin = x_ref[...]
    # Diffs in bf16 are fine on v6e/v7x (bf16 VALU); everything else uses f32.
    x = xin if xin.dtype == jnp.bfloat16 else xin.astype(jnp.float32)
    R, HW = x.shape

    row = lax.broadcasted_iota(jnp.int32, (R, HW), 0)
    lane = lax.broadcasted_iota(jnp.int32, (R, HW), 1)

    # Temporal diff |x[t] - x[t+1]|: rotate rows by +1 (positive-normalised shift).
    dt = jnp.abs(x - pltpu.roll(x, (R - 1) % R, 0))
    dt = jnp.where(row % T != T - 1, dt, 0.0)

    # Vertical diff |x[h, w] - x[h+1, w]|: shift by W along the flattened lane axis.
    dh = jnp.abs(x - pltpu.roll(x, (HW - W) % HW, 1))
    dh = jnp.where(lane < (H - 1) * W, dh, 0.0)

    # Horizontal diff |x[h, w] - x[h, w+1]|: shift by 1 along the flattened lane axis.
    dw = jnp.abs(x - pltpu.roll(x, (HW - 1) % HW, 1))
    dw = jnp.where(lane % W != W - 1, dw, 0.0)

    # Accumulate in f32 regardless of compute dtype, reduce once per block.
    partial = jnp.sum(
        dt.astype(jnp.float32) + dh.astype(jnp.float32) + dw.astype(jnp.float32)
    )
    out_ref[...] = jnp.full(out_ref.shape, partial, dtype=out_ref.dtype)


def _choose_slices_per_block(num_slices, T, HW, itemsize, target_bytes=2 << 20):
    """Largest divisor of num_slices whose block fits ~target_bytes and keeps the
    sublane dim (slices*T) 8-aligned (or covers the whole array)."""
    slice_bytes = T * HW * itemsize
    legal = [
        d
        for d in range(1, num_slices + 1)
        if num_slices % d == 0 and ((d * T) % 8 == 0 or d == num_slices)
    ]
    fitting = [d for d in legal if d * slice_bytes <= target_bytes]
    return max(fitting) if fitting else min(legal)


def total_variation_loss(inputs):
    """inputs: (N, C, T, H, W) array.  Returns scalar float32 TV loss."""
    N, C, T, H, W = inputs.shape
    B = N * C
    HW = H * W

    # Lane-dense relayout: rows = (n, c, t), lanes = flattened (h, w).
    x2d = inputs.reshape(B * T, HW)

    itemsize = jnp.dtype(inputs.dtype).itemsize
    bb = _choose_slices_per_block(B, T, HW, itemsize)
    rows_per_block = bb * T
    grid = B // bb

    kernel = functools.partial(_tv_kernel, T=T, H=H, W=W)

    total_elems = B * T * HW
    cost = pl.CostEstimate(
        flops=9 * total_elems,  # 3 directions x (sub + abs + select/add)
        transcendentals=0,
        bytes_accessed=total_elems * itemsize + grid * 8 * 128 * 4,
    )

    partials = pl.pallas_call(
        kernel,
        out_shape=jax.ShapeDtypeStruct((grid, 8, 128), jnp.float32),
        grid_spec=pltpu.PrefetchScalarGridSpec(
            num_scalar_prefetch=0,
            grid=(grid,),
            in_specs=[pl.BlockSpec((rows_per_block, HW), lambda i: (i, 0))],
            out_specs=pl.BlockSpec((1, 8, 128), lambda i: (i, 0, 0)),
        ),
        compiler_params=pltpu.CompilerParams(
            dimension_semantics=("parallel",),  # independent partials per block
            vmem_limit_bytes=32 * 1024 * 1024,
        ),
        cost_estimate=cost,
    )(x2d)

    # Tiny final reduction over per-block partial sums (outside the kernel).
    return jnp.sum(partials[:, 0, 0])


def _reference_tv_loss(inputs):
    loss = 0.0
    loss += jnp.abs(inputs[:, :, :-1, :, :] - inputs[:, :, 1:, :, :]).sum()
    loss += jnp.abs(inputs[:, :, :, :-1, :] - inputs[:, :, :, 1:, :]).sum()
    loss += jnp.abs(inputs[:, :, :, :, :-1] - inputs[:, :, :, :, 1:]).sum()
    return loss


if __name__ == "__main__":
    key = jax.random.PRNGKey(0)
    # Small 5D input consistent with the module: (N, C, T, H, W)
    N, C, T, H, W = 2, 4, 8, 16, 16
    x = jax.random.normal(key, (N, C, T, H, W), dtype=jnp.float32)

    loss = total_variation_loss(x)
    loss = jax.block_until_ready(loss)

    ref = _reference_tv_loss(x)
    assert jnp.allclose(loss, ref, rtol=1e-4, atol=1e-2), (loss, ref)

    print("KERNEL_OK")
</pallas_src>

<mosaic_0001>
module attributes {stable_mosaic.version = 11 : i64} {
  func.func @_tv_kernel(%arg0: i32, %arg1: memref<64x256xf32, #tpu.memory_space<vmem>>, %arg2: memref<1x8x128xf32, #tpu.memory_space<vmem>>) attributes {dimension_semantics = [#tpu.dimension_semantics<parallel>], iteration_bounds = array<i64: 1>, scalar_prefetch = 0 : i64, scratch_operands = 0 : i64, tpu.core_type = #tpu.core_type<tc>, window_params = [{transform_indices = @transform_0, window_bounds = array<i64: 64, 256>}, {transform_indices = @transform_1, window_bounds = array<i64: 1, 8, 128>}]} {
    %c0 = arith.constant 0 : index
    %c0_0 = arith.constant 0 : index
    %0 = vector.load %arg1[%c0, %c0_0] : memref<64x256xf32, #tpu.memory_space<vmem>>, vector<64x256xf32>
    %1 = tpu.iota {dimensions = array<i32: 0>} : vector<64x256xi32>
    %2 = tpu.iota {dimensions = array<i32: 1>} : vector<64x256xi32>
    %c63_i32 = arith.constant 63 : i32
    %3 = tpu.dynamic_rotate %0 by %c63_i32 dim 0 : vector<64x256xf32>, i32 -> vector<64x256xf32>
    %4 = arith.subf %0, %3 : vector<64x256xf32>
    %5 = math.absf %4 : vector<64x256xf32>
    %c8_i32 = arith.constant 8 : i32
    %c0_i32 = arith.constant 0 : i32
    %6 = arith.cmpi eq, %c8_i32, %c0_i32 : i32
    %c1_i32 = arith.constant 1 : i32
    %7 = arith.select %6, %c1_i32, %c8_i32 : i32
    %8 = vector.broadcast %7 : i32 to vector<64x256xi32>
    %9 = arith.remsi %1, %8 : vector<64x256xi32>
    %c0_i32_1 = arith.constant 0 : i32
    %10 = vector.broadcast %c0_i32_1 : i32 to vector<64x256xi32>
    %11 = arith.cmpi ne, %9, %10 : vector<64x256xi32>
    %c0_i32_2 = arith.constant 0 : i32
    %12 = vector.broadcast %c0_i32_2 : i32 to vector<64x256xi32>
    %13 = arith.cmpi slt, %9, %12 : vector<64x256xi32>
    %c0_i32_3 = arith.constant 0 : i32
    %14 = arith.cmpi slt, %7, %c0_i32_3 : i32
    %15 = vector.broadcast %14 : i1 to vector<64x256xi1>
    %16 = vector.broadcast %15 : vector<64x256xi1> to vector<64x256xi1>
    %17 = arith.xori %13, %16 : vector<64x256xi1>
    %18 = arith.andi %17, %11 : vector<64x256xi1>
    %19 = vector.broadcast %7 : i32 to vector<64x256xi32>
    %20 = arith.addi %9, %19 : vector<64x256xi32>
    %21 = arith.select %18, %20, %9 : vector<64x256xi1>, vector<64x256xi32>
    %c7_i32 = arith.constant 7 : i32
    %22 = vector.broadcast %c7_i32 : i32 to vector<64x256xi32>
    %23 = arith.cmpi ne, %21, %22 : vector<64x256xi32>
    %cst = arith.constant 0.000000e+00 : f32
    %24 = vector.broadcast %cst : f32 to vector<64x256xf32>
    %25 = arith.select %23, %5, %24 : vector<64x256xi1>, vector<64x256xf32>
    %c240_i32 = arith.constant 240 : i32
    %26 = tpu.dynamic_rotate %0 by %c240_i32 dim 1 : vector<64x256xf32>, i32 -> vector<64x256xf32>
    %27 = arith.subf %0, %26 : vector<64x256xf32>
    %28 = math.absf %27 : vector<64x256xf32>
    %c240_i32_4 = arith.constant 240 : i32
    %29 = vector.broadcast %c240_i32_4 : i32 to vector<64x256xi32>
    %30 = arith.cmpi slt, %2, %29 : vector<64x256xi32>
    %cst_5 = arith.constant 0.000000e+00 : f32
    %31 = vector.broadcast %cst_5 : f32 to vector<64x256xf32>
    %32 = arith.select %30, %28, %31 : vector<64x256xi1>, vector<64x256xf32>
    %c255_i32 = arith.constant 255 : i32
    %33 = tpu.dynamic_rotate %0 by %c255_i32 dim 1 : vector<64x256xf32>, i32 -> vector<64x256xf32>
    %34 = arith.subf %0, %33 : vector<64x256xf32>
    %35 = math.absf %34 : vector<64x256xf32>
    %c16_i32 = arith.constant 16 : i32
    %c0_i32_6 = arith.constant 0 : i32
    %36 = arith.cmpi eq, %c16_i32, %c0_i32_6 : i32
    %c1_i32_7 = arith.constant 1 : i32
    %37 = arith.select %36, %c1_i32_7, %c16_i32 : i32
    %38 = vector.broadcast %37 : i32 to vector<64x256xi32>
    %39 = arith.remsi %2, %38 : vector<64x256xi32>
    %c0_i32_8 = arith.constant 0 : i32
    %40 = vector.broadcast %c0_i32_8 : i32 to vector<64x256xi32>
    %41 = arith.cmpi ne, %39, %40 : vector<64x256xi32>
    %c0_i32_9 = arith.constant 0 : i32
    %42 = vector.broadcast %c0_i32_9 : i32 to vector<64x256xi32>
    %43 = arith.cmpi slt, %39, %42 : vector<64x256xi32>
    %c0_i32_10 = arith.constant 0 : i32
    %44 = arith.cmpi slt, %37, %c0_i32_10 : i32
    %45 = vector.broadcast %44 : i1 to vector<64x256xi1>
    %46 = vector.broadcast %45 : vector<64x256xi1> to vector<64x256xi1>
    %47 = arith.xori %43, %46 : vector<64x256xi1>
    %48 = arith.andi %47, %41 : vector<64x256xi1>
    %49 = vector.broadcast %37 : i32 to vector<64x256xi32>
    %50 = arith.addi %39, %49 : vector<64x256xi32>
    %51 = arith.select %48, %50, %39 : vector<64x256xi1>, vector<64x256xi32>
    %c15_i32 = arith.constant 15 : i32
    %52 = vector.broadcast %c15_i32 : i32 to vector<64x256xi32>
    %53 = arith.cmpi ne, %51, %52 : vector<64x256xi32>
    %cst_11 = arith.constant 0.000000e+00 : f32
    %54 = vector.broadcast %cst_11 : f32 to vector<64x256xf32>
    %55 = arith.select %53, %35, %54 : vector<64x256xi1>, vector<64x256xf32>
    %56 = arith.addf %25, %32 : vector<64x256xf32>
    %57 = arith.addf %56, %55 : vector<64x256xf32>
    %58 = vector.shape_cast %57 : vector<64x256xf32> to vector<1x64x256xf32>
    %cst_12 = arith.constant dense<0.000000e+00> : vector<1xf32>
    %59 = vector.multi_reduction <add>, %58, %cst_12 [1, 2] : vector<1x64x256xf32> to vector<1xf32>
    %60 = vector.shape_cast %59 : vector<1xf32> to vector<1x1x1xf32>
    %61 = vector.extract %60[0, 0, 0] : f32 from vector<1x1x1xf32>
    %62 = vector.broadcast %61 : f32 to vector<1x8x128xf32>
    %c0_13 = arith.constant 0 : index
    %c0_14 = arith.constant 0 : index
    %c0_15 = arith.constant 0 : index
    %63 = vector.load %arg2[%c0_13, %c0_14, %c0_15] : memref<1x8x128xf32, #tpu.memory_space<vmem>>, vector<1x8x128xf32>
    tpu.vector_store %arg2[%c0_13, %c0_14, %c0_15], %62 {strides = array<i32>} : memref<1x8x128xf32, #tpu.memory_space<vmem>>, vector<1x8x128xf32>,
    return
  }
  func.func @transform_0(%arg0: i32) -> (i32, i32) {
    %c0_i32 = arith.constant 0 : i32
    %c0_i32_0 = arith.constant 0 : i32
    return %arg0, %c0_i32 : i32, i32
  }
  func.func @transform_1(%arg0: i32) -> (i32, i32, i32) {
    %c0_i32 = arith.constant 0 : i32
    %c0_i32_0 = arith.constant 0 : i32
    %c0_i32_1 = arith.constant 0 : i32
    return %arg0, %c0_i32, %c0_i32_0 : i32, i32, i32
  }
}

</mosaic_0001>

<llo_original>
// kernel: tpu_custom_call.1
$region0: #{tpu_custom_call.1}
  #allocation0 [shape = 'u32[]', space=smem, size = 0x4, offset = 0x4, fixed_abs, tag = 'smem constant byte address 0x4 - core index']
  #allocation1 [shape = 'u32[144,128]{1,0:T(1,128)}', space=vmem, size = 0x12000, scoped, tag = 'internal scratch']
  %s0 = inlined_call_operand.hbm [shape: f32[64,256], index: 0, kind: input, shape index: {}]
  %s1 = inlined_call_operand.hbm [shape: f32[1,8,128], index: 1, kind: output, shape index: {}]
  %s2 = sld [smem:[#allocation0]]
  $region18: #{tpu_custom_call.1} parent=0
    _
  %s4 = ssub.s32 1, %s2
  %s5 = scalar_select 0, %s4, %s2
  $region1: #{tpu_custom_call.1} parent=0
    #allocation2 [shape = 'u8[65536]{0}', space=vmem, size = 0x10000, scoped, tag = 'input window, operand 0, single buffered']
    #allocation3 [shape = 's32[1]{0}', space=sflag, size = 0x4, scoped, tag = 'scoped memory for tpu_custom_call.1']
    #allocation4 [shape = 's32[1]{0}', space=sflag, size = 0x4, scoped, tag = 'scoped memory for tpu_custom_call.1']
    #allocation5 [shape = 'u8[4096]{0}', space=vmem, size = 0x1000, scoped, tag = 'output window, operand 0, single buffered']
    %6 = vsyncpa [#allocation3], 0
    %7 = vsyncpa [#allocation4], 0
    // Predicated region
    $region2: #{tpu_custom_call.1} parent=1 // pred_check
      _
    $region3: #{tpu_custom_call.1} parent=1 // pred_check_branch
      %9 = sbr.rel (0) target = $region5
    $region4: #{tpu_custom_call.1} parent=1 // pred_region
      %s11 = ssub.s32 2048, 2048
      %12 = vsyncadd [#allocation3], %s11
      %s13 = sshll.u32 [#allocation2], 4
      %s14 = int_to_ptr.vmem [resolvable:$true] %s13
      %19 = dma.hbm_to_vmem [thread:$0]  %s0, 2048, %s14, [#allocation3], 256, 256, 16
    $region5: #{tpu_custom_call.1} parent=1 // pred_fallthru
      _
    // Predicated region
    $region6: #{tpu_custom_call.1} parent=1 // pred_check
      _
    $region7: #{tpu_custom_call.1} parent=1 // pred_check_branch
      %21 = sbr.rel (0) target = $region9
    $region8: #{tpu_custom_call.1} parent=1 // pred_region
      %22 = dma.done [#allocation3], 2048
    $region9: #{tpu_custom_call.1} parent=1 // pred_fallthru
      _
    %v23 = vld [vmem:[#allocation2] sm:$0xff]
    %v24 = vld [vmem:[#allocation2 + $0x8] sm:$0xff]
    %v25 = vld [vmem:[#allocation2 + $0x10] sm:$0xff]
    %v26 = vld [vmem:[#allocation2 + $0x18] sm:$0xff]
    %v27 = vld [vmem:[#allocation2 + $0x20] sm:$0xff]
    %v28 = vld [vmem:[#allocation2 + $0x28] sm:$0xff]
    %v29 = vld [vmem:[#allocation2 + $0x30] sm:$0xff]
    %v30 = vld [vmem:[#allocation2 + $0x38] sm:$0xff]
    %v31 = vld [vmem:[#allocation2 + $0x40] sm:$0xff]
    %v32 = vld [vmem:[#allocation2 + $0x48] sm:$0xff]
    %v33 = vld [vmem:[#allocation2 + $0x50] sm:$0xff]
    %v34 = vld [vmem:[#allocation2 + $0x58] sm:$0xff]
    %v35 = vld [vmem:[#allocation2 + $0x60] sm:$0xff]
    %v36 = vld [vmem:[#allocation2 + $0x68] sm:$0xff]
    %v37 = vld [vmem:[#allocation2 + $0x70] sm:$0xff]
    %v38 = vld [vmem:[#allocation2 + $0x78] sm:$0xff]
    %v39 = vlaneseq
    %v40 = vshrl.u32 %v39, 7
    %v41 = vadd.s32 %v40, 8
    %v42 = vadd.s32 %v40, 16
    %v43 = vadd.s32 %v40, 24
    %v44 = vadd.s32 %v40, 32
    %v45 = vadd.s32 %v40, 40
    %v46 = vadd.s32 %v40, 48
    %v47 = vadd.s32 %v40, 56
    %v48 = vlaneseq
    %v49 = vand.u32 %v48, 127
    %v50 = vadd.s32 %v49, 128
    %v51 = vrot.slane %v23, 1
    %v52 = vrot.slane %v24, 1
    %v53 = vrot.slane %v25, 1
    %v54 = vrot.slane %v26, 1
    %v55 = vrot.slane %v27, 1
    %v56 = vrot.slane %v28, 1
    %v57 = vrot.slane %v29, 1
    %v58 = vrot.slane %v30, 1
    %v59 = vrot.slane %v31, 1
    %v60 = vrot.slane %v32, 1
    %v61 = vrot.slane %v33, 1
    %v62 = vrot.slane %v34, 1
    %v63 = vrot.slane %v35, 1
    %v64 = vrot.slane %v36, 1
    %v65 = vrot.slane %v37, 1
    %v66 = vrot.slane %v38, 1
    %vm67 = vcmp.lt.s32.totalorder %v40, 7
    %v68 = vsel %vm67, %v63, %v65
    %v69 = vsel %vm67, %v64, %v66
    %v70 = vsel %vm67, %v61, %v63
    %v71 = vsel %vm67, %v62, %v64
    %v72 = vsel %vm67, %v59, %v61
    %v73 = vsel %vm67, %v60, %v62
    %v74 = vsel %vm67, %v57, %v59
    %v75 = vsel %vm67, %v58, %v60
    %v76 = vsel %vm67, %v55, %v57
    %v77 = vsel %vm67, %v56, %v58
    %v78 = vsel %vm67, %v53, %v55
    %v79 = vsel %vm67, %v54, %v56
    %v80 = vsel %vm67, %v51, %v53
    %v81 = vsel %vm67, %v52, %v54
    %v82 = vsel %vm67, %v65, %v51
    %v83 = vsel %vm67, %v66, %v52
    %v84 = vsub.f32 %v23, %v80
    %v85 = vsub.f32 %v24, %v81
    %v86 = vsub.f32 %v25, %v78
    %v87 = vsub.f32 %v26, %v79
    %v88 = vsub.f32 %v27, %v76
    %v89 = vsub.f32 %v28, %v77
    %v90 = vsub.f32 %v29, %v74
    %v91 = vsub.f32 %v30, %v75
    %v92 = vsub.f32 %v31, %v72
    %v93 = vsub.f32 %v32, %v73
    %v94 = vsub.f32 %v33, %v70
    %v95 = vsub.f32 %v34, %v71
    %v96 = vsub.f32 %v35, %v68
    %v97 = vsub.f32 %v36, %v69
    %v98 = vsub.f32 %v37, %v82
    %v99 = vsub.f32 %v38, %v83
    %v100 = vand.u32 2147483647, %v84
    %v101 = vand.u32 2147483647, %v85
    %v102 = vand.u32 2147483647, %v86
    %v103 = vand.u32 2147483647, %v87
    %v104 = vand.u32 2147483647, %v88
    %v105 = vand.u32 2147483647, %v89
    %v106 = vand.u32 2147483647, %v90
    %v107 = vand.u32 2147483647, %v91
    %v108 = vand.u32 2147483647, %v92
    %v109 = vand.u32 2147483647, %v93
    %v110 = vand.u32 2147483647, %v94
    %v111 = vand.u32 2147483647, %v95
    %v112 = vand.u32 2147483647, %v96
    %v113 = vand.u32 2147483647, %v97
    %v114 = vand.u32 2147483647, %v98
    %v115 = vand.u32 2147483647, %v99
    %vm116 = vcmp.lt.s32.totalorder %v40, 0
    %v117 = vsub.s32 0, %v40
    %v118 = vsel %vm116, %v117, %v40
    %v119 = vshrl.u32 %v118, 3
    %v120 = vand.u32 %v118, 7
    %v121 = vsub.s32 0, %v120
    %v122 = vsel %vm116, %v121, %v120
    %vm123 = vcmp.lt.s32.totalorder %v41, 0
    %v124 = vsub.s32 0, %v41
    %v125 = vsel %vm123, %v124, %v41
    %v126 = vshrl.u32 %v125, 3
    %v127 = vand.u32 %v125, 7
    %v128 = vsub.s32 0, %v127
    %v129 = vsel %vm123, %v128, %v127
    %vm130 = vcmp.lt.s32.totalorder %v42, 0
    %v131 = vsub.s32 0, %v42
    %v132 = vsel %vm130, %v131, %v42
    %v133 = vshrl.u32 %v132, 3
    %v134 = vand.u32 %v132, 7
    %v135 = vsub.s32 0, %v134
    %v136 = vsel %vm130, %v135, %v134
    %vm137 = vcmp.lt.s32.totalorder %v43, 0
    %v138 = vsub.s32 0, %v43
    %v139 = vsel %vm137, %v138, %v43
    %v140 = vshrl.u32 %v139, 3
    %v141 = vand.u32 %v139, 7
    %v142 = vsub.s32 0, %v141
    %v143 = vsel %vm137, %v142, %v141
    %vm144 = vcmp.lt.s32.totalorder %v44, 0
    %v145 = vsub.s32 0, %v44
    %v146 = vsel %vm144, %v145, %v44
    %v147 = vshrl.u32 %v146, 3
    %v148 = vand.u32 %v146, 7
    %v149 = vsub.s32 0, %v148
    %v150 = vsel %vm144, %v149, %v148
    %vm151 = vcmp.lt.s32.totalorder %v45, 0
    %v152 = vsub.s32 0, %v45
    %v153 = vsel %vm151, %v152, %v45
    %v154 = vshrl.u32 %v153, 3
    %v155 = vand.u32 %v153, 7
    %v156 = vsub.s32 0, %v155
    %v157 = vsel %vm151, %v156, %v155
    %vm158 = vcmp.lt.s32.totalorder %v46, 0
    %v159 = vsub.s32 0, %v46
    %v160 = vsel %vm158, %v159, %v46
    %v161 = vshrl.u32 %v160, 3
    %v162 = vand.u32 %v160, 7
    %v163 = vsub.s32 0, %v162
    %v164 = vsel %vm158, %v163, %v162
    %vm165 = vcmp.lt.s32.totalorder %v47, 0
    %v166 = vsub.s32 0, %v47
    %v167 = vsel %vm165, %v166, %v47
    %v168 = vshrl.u32 %v167, 3
    %v169 = vand.u32 %v167, 7
    %v170 = vsub.s32 0, %v169
    %v171 = vsel %vm165, %v170, %v169
    %vm172 = vcmp.ne.s32.totalorder %v122, 0
    %vm173 = vcmp.ne.s32.totalorder %v129, 0
    %vm174 = vcmp.ne.s32.totalorder %v136, 0
    %vm175 = vcmp.ne.s32.totalorder %v143, 0
    %vm176 = vcmp.ne.s32.totalorder %v150, 0
    %vm177 = vcmp.ne.s32.totalorder %v157, 0
    %vm178 = vcmp.ne.s32.totalorder %v164, 0
    %vm179 = vcmp.ne.s32.totalorder %v171, 0
    %vm180 = vcmp.lt.s32.totalorder %v122, 0
    %vm181 = vcmp.lt.s32.totalorder %v129, 0
    %vm182 = vcmp.lt.s32.totalorder %v136, 0
    %vm183 = vcmp.lt.s32.totalorder %v143, 0
    %vm184 = vcmp.lt.s32.totalorder %v150, 0
    %vm185 = vcmp.lt.s32.totalorder %v157, 0
    %vm186 = vcmp.lt.s32.totalorder %v164, 0
    %vm187 = vcmp.lt.s32.totalorder %v171, 0
    %vm188 = vmand %vm180, %vm172
    %vm189 = vmand %vm181, %vm173
    %vm190 = vmand %vm182, %vm174
    %vm191 = vmand %vm183, %vm175
    %vm192 = vmand %vm184, %vm176
    %vm193 = vmand %vm185, %vm177
    %vm194 = vmand %vm186, %vm178
    %vm195 = vmand %vm187, %vm179
    %v196 = vadd.s32 %v122, 8
    %v197 = vadd.s32 %v129, 8
    %v198 = vadd.s32 %v136, 8
    %v199 = vadd.s32 %v143, 8
    %v200 = vadd.s32 %v150, 8
    %v201 = vadd.s32 %v157, 8
    %v202 = vadd.s32 %v164, 8
    %v203 = vadd.s32 %v171, 8
    %v204 = vsel %vm188, %v196, %v122
    %v205 = vsel %vm189, %v197, %v129
    %v206 = vsel %vm190, %v198, %v136
    %v207 = vsel %vm191, %v199, %v143
    %v208 = vsel %vm192, %v200, %v150
    %v209 = vsel %vm193, %v201, %v157
    %v210 = vsel %vm194, %v202, %v164
    %v211 = vsel %vm195, %v203, %v171
    %vm212 = vcmp.ne.s32.totalorder %v204, 7
    %vm213 = vcmp.ne.s32.totalorder %v205, 7
    %vm214 = vcmp.ne.s32.totalorder %v206, 7
    %vm215 = vcmp.ne.s32.totalorder %v207, 7
    %vm216 = vcmp.ne.s32.totalorder %v208, 7
    %vm217 = vcmp.ne.s32.totalorder %v209, 7
    %vm218 = vcmp.ne.s32.totalorder %v210, 7
    %vm219 = vcmp.ne.s32.totalorder %v211, 7
    %v220 = vsel %vm212, %v100, 0.0
    %v221 = vsel %vm212, %v101, 0.0
    %v222 = vsel %vm213, %v102, 0.0
    %v223 = vsel %vm213, %v103, 0.0
    %v224 = vsel %vm214, %v104, 0.0
    %v225 = vsel %vm214, %v105, 0.0
    %v226 = vsel %vm215, %v106, 0.0
    %v227 = vsel %vm215, %v107, 0.0
    %v228 = vsel %vm216, %v108, 0.0
    %v229 = vsel %vm216, %v109, 0.0
    %v230 = vsel %vm217, %v110, 0.0
    %v231 = vsel %vm217, %v111, 0.0
    %v232 = vsel %vm218, %v112, 0.0
    %v233 = vsel %vm218, %v113, 0.0
    %v234 = vsel %vm219, %v114, 0.0
    %v235 = vsel %vm219, %v115, 0.0
    %236 = vrot.lane.b32.xlu0 %v23, 112
    %v237 = vpop.permute.xlu0 %236
    %238 = vrot.lane.b32.xlu0 %v25, 112
    %v239 = vpop.permute.xlu0 %238
    %240 = vrot.lane.b32.xlu0 %v27, 112
    %v241 = vpop.permute.xlu0 %240
    %242 = vrot.lane.b32.xlu0 %v29, 112
    %v243 = vpop.permute.xlu0 %242
    %244 = vrot.lane.b32.xlu0 %v31, 112
    %v245 = vpop.permute.xlu0 %244
    %246 = vrot.lane.b32.xlu0 %v33, 112
    %v247 = vpop.permute.xlu0 %246
    %248 = vrot.lane.b32.xlu0 %v35, 112
    %v249 = vpop.permute.xlu0 %248
    %250 = vrot.lane.b32.xlu0 %v37, 112
    %v251 = vpop.permute.xlu0 %250
    %252 = vrot.lane.b32.xlu0 %v24, 112
    %v253 = vpop.permute.xlu0 %252
    %254 = vrot.lane.b32.xlu0 %v26, 112
    %v255 = vpop.permute.xlu0 %254
    %256 = vrot.lane.b32.xlu0 %v28, 112
    %v257 = vpop.permute.xlu0 %256
    %258 = vrot.lane.b32.xlu0 %v30, 112
    %v259 = vpop.permute.xlu0 %258
    %260 = vrot.lane.b32.xlu0 %v32, 112
    %v261 = vpop.permute.xlu0 %260
    %262 = vrot.lane.b32.xlu0 %v34, 112
    %v263 = vpop.permute.xlu0 %262
    %264 = vrot.lane.b32.xlu0 %v36, 112
    %v265 = vpop.permute.xlu0 %264
    %266 = vrot.lane.b32.xlu0 %v38, 112
    %v267 = vpop.permute.xlu0 %266
    %vm268 = vcmp.lt.s32.totalorder %v49, 112
    %v269 = vsel %vm268, %v237, %v253
    %v270 = vsel %vm268, %v239, %v255
    %v271 = vsel %vm268, %v241, %v257
    %v272 = vsel %vm268, %v243, %v259
    %v273 = vsel %vm268, %v245, %v261
    %v274 = vsel %vm268, %v247, %v263
    %v275 = vsel %vm268, %v249, %v265
    %v276 = vsel %vm268, %v251, %v267
    %v277 = vsel %vm268, %v253, %v237
    %v278 = vsel %vm268, %v255, %v239
    %v279 = vsel %vm268, %v257, %v241
    %v280 = vsel %vm268, %v259, %v243
    %v281 = vsel %vm268, %v261, %v245
    %v282 = vsel %vm268, %v263, %v247
    %v283 = vsel %vm268, %v265, %v249
    %v284 = vsel %vm268, %v267, %v251
    %v285 = vsub.f32 %v23, %v269
    %v286 = vsub.f32 %v24, %v277
    %v287 = vsub.f32 %v25, %v270
    %v288 = vsub.f32 %v26, %v278
    %v289 = vsub.f32 %v27, %v271
    %v290 = vsub.f32 %v28, %v279
    %v291 = vsub.f32 %v29, %v272
    %v292 = vsub.f32 %v30, %v280
    %v293 = vsub.f32 %v31, %v273
    %v294 = vsub.f32 %v32, %v281
    %v295 = vsub.f32 %v33, %v274
    %v296 = vsub.f32 %v34, %v282
    %v297 = vsub.f32 %v35, %v275
    %v298 = vsub.f32 %v36, %v283
    %v299 = vsub.f32 %v37, %v276
    %v300 = vsub.f32 %v38, %v284
    %v301 = vand.u32 2147483647, %v285
    %v302 = vand.u32 2147483647, %v286
    %v303 = vand.u32 2147483647, %v287
    %v304 = vand.u32 2147483647, %v288
    %v305 = vand.u32 2147483647, %v289
    %v306 = vand.u32 2147483647, %v290
    %v307 = vand.u32 2147483647, %v291
    %v308 = vand.u32 2147483647, %v292
    %v309 = vand.u32 2147483647, %v293
    %v310 = vand.u32 2147483647, %v294
    %v311 = vand.u32 2147483647, %v295
    %v312 = vand.u32 2147483647, %v296
    %v313 = vand.u32 2147483647, %v297
    %v314 = vand.u32 2147483647, %v298
    %v315 = vand.u32 2147483647, %v299
    %v316 = vand.u32 2147483647, %v300
    %vm317 = vcmp.lt.s32.totalorder %v49, 240
    %vm318 = vcmp.lt.s32.totalorder %v50, 240
    %v319 = vsel %vm317, %v301, 0.0
    %v320 = vsel %vm318, %v302, 0.0
    %v321 = vsel %vm317, %v303, 0.0
    %v322 = vsel %vm318, %v304, 0.0
    %v323 = vsel %vm317, %v305, 0.0
    %v324 = vsel %vm318, %v306, 0.0
    %v325 = vsel %vm317, %v307, 0.0
    %v326 = vsel %vm318, %v308, 0.0
    %v327 = vsel %vm317, %v309, 0.0
    %v328 = vsel %vm318, %v310, 0.0
    %v329 = vsel %vm317, %v311, 0.0
    %v330 = vsel %vm318, %v312, 0.0
    %v331 = vsel %vm317, %v313, 0.0
    %v332 = vsel %vm318, %v314, 0.0
    %v333 = vsel %vm317, %v315, 0.0
    %v334 = vsel %vm318, %v316, 0.0
    %335 = vrot.lane.b32.xlu0 %v23, 127
    %v336 = vpop.permute.xlu0 %335
    %337 = vrot.lane.b32.xlu0 %v25, 127
    %v338 = vpop.permute.xlu0 %337
    %339 = vrot.lane.b32.xlu0 %v27, 127
    %v340 = vpop.permute.xlu0 %339
    %341 = vrot.lane.b32.xlu0 %v29, 127
    %v342 = vpop.permute.xlu0 %341
    %343 = vrot.lane.b32.xlu0 %v31, 127
    %v344 = vpop.permute.xlu0 %343
    %345 = vrot.lane.b32.xlu0 %v33, 127
    %v346 = vpop.permute.xlu0 %345
    %347 = vrot.lane.b32.xlu0 %v35, 127
    %v348 = vpop.permute.xlu0 %347
    %349 = vrot.lane.b32.xlu0 %v37, 127
    %v350 = vpop.permute.xlu0 %349
    %351 = vrot.lane.b32.xlu0 %v24, 127
    %v352 = vpop.permute.xlu0 %351
    %353 = vrot.lane.b32.xlu0 %v26, 127
    %v354 = vpop.permute.xlu0 %353
    %355 = vrot.lane.b32.xlu0 %v28, 127
    %v356 = vpop.permute.xlu0 %355
    %357 = vrot.lane.b32.xlu0 %v30, 127
    %v358 = vpop.permute.xlu0 %357
    %359 = vrot.lane.b32.xlu0 %v32, 127
    %v360 = vpop.permute.xlu0 %359
    %361 = vrot.lane.b32.xlu0 %v34, 127
    %v362 = vpop.permute.xlu0 %361
    %363 = vrot.lane.b32.xlu0 %v36, 127
    %v364 = vpop.permute.xlu0 %363
    %365 = vrot.lane.b32.xlu0 %v38, 127
    %v366 = vpop.permute.xlu0 %365
    %vm367 = vcmp.lt.s32.totalorder %v49, 127
    %v368 = vsel %vm367, %v336, %v352
    %v369 = vsel %vm367, %v338, %v354
    %v370 = vsel %vm367, %v340, %v356
    %v371 = vsel %vm367, %v342, %v358
    %v372 = vsel %vm367, %v344, %v360
    %v373 = vsel %vm367, %v346, %v362
    %v374 = vsel %vm367, %v348, %v364
    %v375 = vsel %vm367, %v350, %v366
    %v376 = vsel %vm367, %v352, %v336
    %v377 = vsel %vm367, %v354, %v338
    %v378 = vsel %vm367, %v356, %v340
    %v379 = vsel %vm367, %v358, %v342
    %v380 = vsel %vm367, %v360, %v344
    %v381 = vsel %vm367, %v362, %v346
    %v382 = vsel %vm367, %v364, %v348
    %v383 = vsel %vm367, %v366, %v350
    %v384 = vsub.f32 %v23, %v368
    %v385 = vsub.f32 %v24, %v376
    %v386 = vsub.f32 %v25, %v369
    %v387 = vsub.f32 %v26, %v377
    %v388 = vsub.f32 %v27, %v370
    %v389 = vsub.f32 %v28, %v378
    %v390 = vsub.f32 %v29, %v371
    %v391 = vsub.f32 %v30, %v379
    %v392 = vsub.f32 %v31, %v372
    %v393 = vsub.f32 %v32, %v380
    %v394 = vsub.f32 %v33, %v373
    %v395 = vsub.f32 %v34, %v381
    %v396 = vsub.f32 %v35, %v374
    %v397 = vsub.f32 %v36, %v382
    %v398 = vsub.f32 %v37, %v375
    %v399 = vsub.f32 %v38, %v383
    %v400 = vand.u32 2147483647, %v384
    %v401 = vand.u32 2147483647, %v385
    %v402 = vand.u32 2147483647, %v386
    %v403 = vand.u32 2147483647, %v387
    %v404 = vand.u32 2147483647, %v388
    %v405 = vand.u32 2147483647, %v389
    %v406 = vand.u32 2147483647, %v390
    %v407 = vand.u32 2147483647, %v391
    %v408 = vand.u32 2147483647, %v392
    %v409 = vand.u32 2147483647, %v393
    %v410 = vand.u32 2147483647, %v394
    %v411 = vand.u32 2147483647, %v395
    %v412 = vand.u32 2147483647, %v396
    %v413 = vand.u32 2147483647, %v397
    %v414 = vand.u32 2147483647, %v398
    %v415 = vand.u32 2147483647, %v399
    %vm416 = vcmp.lt.s32.totalorder %v49, 0
    %v417 = vsub.s32 0, %v49
    %v418 = vsel %vm416, %v417, %v49
    %v419 = vshrl.u32 %v418, 4
    %v420 = vand.u32 %v418, 15
    %v421 = vsub.s32 0, %v420
    %v422 = vsel %vm416, %v421, %v420
    %vm423 = vcmp.lt.s32.totalorder %v50, 0
    %v424 = vsub.s32 0, %v50
    %v425 = vsel %vm423, %v424, %v50
    %v426 = vshrl.u32 %v425, 4
    %v427 = vand.u32 %v425, 15
    %v428 = vsub.s32 0, %v427
    %v429 = vsel %vm423, %v428, %v427
    %vm430 = vcmp.ne.s32.totalorder %v422, 0
    %vm431 = vcmp.ne.s32.totalorder %v429, 0
    %vm432 = vcmp.lt.s32.totalorder %v422, 0
    %vm433 = vcmp.lt.s32.totalorder %v429, 0
    %vm434 = vmand %vm432, %vm430
    %vm435 = vmand %vm433, %vm431
    %v436 = vadd.s32 %v422, 16
    %v437 = vadd.s32 %v429, 16
    %v438 = vsel %vm434, %v436, %v422
    %v439 = vsel %vm435, %v437, %v429
    %vm440 = vcmp.ne.s32.totalorder %v438, 15
    %vm441 = vcmp.ne.s32.totalorder %v439, 15
    %v442 = vsel %vm440, %v400, 0.0
    %v443 = vsel %vm441, %v401, 0.0
    %v444 = vsel %vm440, %v402, 0.0
    %v445 = vsel %vm441, %v403, 0.0
    %v446 = vsel %vm440, %v404, 0.0
    %v447 = vsel %vm441, %v405, 0.0
    %v448 = vsel %vm440, %v406, 0.0
    %v449 = vsel %vm441, %v407, 0.0
    %v450 = vsel %vm440, %v408, 0.0
    %v451 = vsel %vm441, %v409, 0.0
    %v452 = vsel %vm440, %v410, 0.0
    %v453 = vsel %vm441, %v411, 0.0
    %v454 = vsel %vm440, %v412, 0.0
    %v455 = vsel %vm441, %v413, 0.0
    %v456 = vsel %vm440, %v414, 0.0
    %v457 = vsel %vm441, %v415, 0.0
    %v458 = vadd.f32 %v220, %v319
    %v459 = vadd.f32 %v221, %v320
    %v460 = vadd.f32 %v222, %v321
    %v461 = vadd.f32 %v223, %v322
    %v462 = vadd.f32 %v224, %v323
    %v463 = vadd.f32 %v225, %v324
    %v464 = vadd.f32 %v226, %v325
    %v465 = vadd.f32 %v227, %v326
    %v466 = vadd.f32 %v228, %v327
    %v467 = vadd.f32 %v229, %v328
    %v468 = vadd.f32 %v230, %v329
    %v469 = vadd.f32 %v231, %v330
    %v470 = vadd.f32 %v232, %v331
    %v471 = vadd.f32 %v233, %v332
    %v472 = vadd.f32 %v234, %v333
    %v473 = vadd.f32 %v235, %v334
    %v474 = vadd.f32 %v458, %v442
    %v475 = vadd.f32 %v459, %v443
    %v476 = vadd.f32 %v460, %v444
    %v477 = vadd.f32 %v461, %v445
    %v478 = vadd.f32 %v462, %v446
    %v479 = vadd.f32 %v463, %v447
    %v480 = vadd.f32 %v464, %v448
    %v481 = vadd.f32 %v465, %v449
    %v482 = vadd.f32 %v466, %v450
    %v483 = vadd.f32 %v467, %v451
    %v484 = vadd.f32 %v468, %v452
    %v485 = vadd.f32 %v469, %v453
    %v486 = vadd.f32 %v470, %v454
    %v487 = vadd.f32 %v471, %v455
    %v488 = vadd.f32 %v472, %v456
    %v489 = vadd.f32 %v473, %v457
    %v490 = vadd.f32 %v474, %v475
    %v491 = vadd.f32 %v490, %v476
    %v492 = vadd.f32 %v491, %v477
    %v493 = vadd.f32 %v492, %v478
    %v494 = vadd.f32 %v493, %v479
    %v495 = vadd.f32 %v494, %v480
    %v496 = vadd.f32 %v495, %v481
    %v497 = vadd.f32 %v496, %v482
    %v498 = vadd.f32 %v497, %v483
    %v499 = vadd.f32 %v498, %v484
    %v500 = vadd.f32 %v499, %v485
    %v501 = vadd.f32 %v500, %v486
    %v502 = vadd.f32 %v501, %v487
    %v503 = vadd.f32 %v502, %v488
    %v504 = vadd.f32 %v503, %v489
    %505 = vadd.xlane.f32.xlu0 %v504
    %v506 = vpop.xlane.xlu0 %505
    %v507 = vrot.slane %v506, 4
    %v508 = vadd.f32 %v506, %v507
    %v509 = vrot.slane %v508, 2
    %v510 = vadd.f32 %v508, %v509
    %v511 = vrot.slane %v510, 1
    %v512 = vadd.f32 %v510, %v511
    %s513 = vtos %v512
    %v514 = vstv %s513
    %515 = vst [vmem:[#allocation5] sm:$0xff] %v514
    // Predicated region
    $region10: #{tpu_custom_call.1} parent=1 // pred_check
      _
    $region11: #{tpu_custom_call.1} parent=1 // pred_check_branch
      %517 = sbr.rel (0) target = $region13
    $region12: #{tpu_custom_call.1} parent=1 // pred_region
      %s519 = ssub.s32 128, 128
      %520 = vsyncadd [#allocation4], %s519
      %s522 = sshll.u32 [#allocation5], 4
      %s523 = int_to_ptr.vmem [resolvable:$true] %s522
      %525 = dma.vmem_to_hbm [thread:$0]  %s523, 128, %s1, [#allocation4]
    $region13: #{tpu_custom_call.1} parent=1 // pred_fallthru
      _
    // Predicated region
    $region14: #{tpu_custom_call.1} parent=1 // pred_check
      _
    $region15: #{tpu_custom_call.1} parent=1 // pred_check_branch
      %527 = sbr.rel (0) target = $region17
    $region16: #{tpu_custom_call.1} parent=1 // pred_region
      %528 = dma.done [#allocation4], 128
    $region17: #{tpu_custom_call.1} parent=1 // pred_fallthru
      _
    %529 = vsyncpa [#allocation3], 1
    %530 = vsyncpa [#allocation4], 1

</llo_original>
